<compile_context>
chip_gen: v5e
topology: v5e:2x2
jax: 0.10.0
libtpu: 0.0.40
codegen_flags: <defaults>
</compile_context>

<pallas_src>
import functools
import math

import jax
import jax.numpy as jnp
from jax.experimental import pallas as pl
from jax.experimental.pallas import tpu as pltpu

BN_EPS = 1e-5
BN_SCALE = 1.0 / math.sqrt(1.0 + BN_EPS)  # eval-mode BatchNorm1d, fresh stats
LANE = 128
NEG_INF = -1e30

_VMEM_LIMIT_CACHE = None


def _vmem_limit_bytes():
    """Generation-aware VMEM limit: ~75% of physical, capped at 96 MiB."""
    global _VMEM_LIMIT_CACHE
    if _VMEM_LIMIT_CACHE is None:
        cap = None
        try:
            cap = getattr(pltpu.get_tpu_info(), "vmem_capacity_bytes", None)
        except Exception:
            cap = None
        if not cap:
            cap = 64 * 1024 * 1024  # conservative fallback (v7x per-TC VMEM)
        _VMEM_LIMIT_CACHE = min(int(cap) * 3 // 4, 96 * 1024 * 1024)
    return _VMEM_LIMIT_CACHE


def _mosaic_params(semantics):
    return pltpu.CompilerParams(
        dimension_semantics=semantics,
        vmem_limit_bytes=_vmem_limit_bytes(),
    )


def _round_up(v, m):
    return ((v + m - 1) // m) * m


def _const_spec(shape):
    """Block spec for a constant-index (weight / fully-resident) operand."""
    # TODO(synk): at realistic sizes mark these single-buffered
    # (pipeline_mode=pl.Buffered(1)) to halve their VMEM footprint (v7x).
    n = len(shape)

    def idx(i):
        return (0,) * n

    return pl.BlockSpec(shape, idx)


def _row_spec(tm, cols):
    return pl.BlockSpec((tm, cols), lambda i: (i, 0))


def _headrow_spec(heads, tm, dh_pad):
    return pl.BlockSpec((heads, tm, dh_pad), lambda i: (0, i, 0))


# ----------------------------- Pallas kernels ------------------------------ #

def _preproj_kernel(*refs, heads, with_input_proj):
    """Fused per-layer projections: (optional input_proj) + X@Wg + head-major QKV."""
    f32 = jnp.float32
    if with_input_proj:
        (x_ref, wp_ref, bp_ref, wg_ref, wq_ref, bq_ref, wk_ref, bk_ref,
         wv_ref, bv_ref, h_ref, xwg_ref, q_ref, k_ref, v_ref) = refs
        h = jnp.dot(x_ref[...], wp_ref[...], preferred_element_type=f32)
        h = (h + bp_ref[...]).astype(h_ref.dtype)
        h_ref[...] = h
    else:
        (x_ref, wg_ref, wq_ref, bq_ref, wk_ref, bk_ref, wv_ref, bv_ref,
         xwg_ref, q_ref, k_ref, v_ref) = refs
        h = x_ref[...]

    xwg_ref[...] = jnp.dot(h, wg_ref[...],
                           preferred_element_type=f32).astype(xwg_ref.dtype)
    # Static unroll over heads; per-head slabs are leading-dim indexed (no
    # lane slicing anywhere).
    for hd in range(heads):
        q_ref[hd] = (jnp.dot(h, wq_ref[hd], preferred_element_type=f32)
                     + bq_ref[hd]).astype(q_ref.dtype)
        k_ref[hd] = (jnp.dot(h, wk_ref[hd], preferred_element_type=f32)
                     + bk_ref[hd]).astype(k_ref.dtype)
        v_ref[hd] = (jnp.dot(h, wv_ref[hd], preferred_element_type=f32)
                     + bv_ref[hd]).astype(v_ref.dtype)


def gps_preproj(x, p, *, tm, heads, dh_pad, input_proj=None):
    """Row-tiled fused projections for one GPS layer."""
    n, cin = x.shape
    c = p["Wg"].shape[0]
    weights = (p["Wg"], p["Wq"], p["bq"], p["Wk"], p["bk"], p["Wv"], p["bv"])
    weight_specs = [_const_spec(w.shape) for w in weights]
    qkv_shape = jax.ShapeDtypeStruct((heads, n, dh_pad), jnp.bfloat16)
    xwg_shape = jax.ShapeDtypeStruct((n, c), jnp.bfloat16)

    if input_proj is not None:
        wp, bp = input_proj
        in_specs = ([_row_spec(tm, cin), _const_spec(wp.shape),
                     _const_spec(bp.shape)] + weight_specs)
        out_shape = (jax.ShapeDtypeStruct((n, c), jnp.bfloat16), xwg_shape,
                     qkv_shape, qkv_shape, qkv_shape)
        out_specs = (_row_spec(tm, c), _row_spec(tm, c),
                     _headrow_spec(heads, tm, dh_pad),
                     _headrow_spec(heads, tm, dh_pad),
                     _headrow_spec(heads, tm, dh_pad))
        args = (x, wp, bp) + weights
    else:
        in_specs = [_row_spec(tm, cin)] + weight_specs
        out_shape = (xwg_shape, qkv_shape, qkv_shape, qkv_shape)
        out_specs = (_row_spec(tm, c),
                     _headrow_spec(heads, tm, dh_pad),
                     _headrow_spec(heads, tm, dh_pad),
                     _headrow_spec(heads, tm, dh_pad))
        args = (x,) + weights

    return pl.pallas_call(
        functools.partial(_preproj_kernel, heads=heads,
                          with_input_proj=input_proj is not None),
        out_shape=out_shape,
        grid=(n // tm,),
        in_specs=in_specs,
        out_specs=out_specs,
        compiler_params=_mosaic_params(("parallel",)),
    )(*args)


def _gps_main_kernel(valid_ref, x_ref, a_ref, xwg_ref, q_ref, k_ref, v_ref,
                     bg_ref, wo_ref, bo_ref, w1_ref, b1_ref, w2_ref, b2_ref,
                     o_ref, *, heads, head_dim, relu_out):
    f32 = jnp.float32
    x = x_ref[...].astype(f32)                                     # [tm, C]

    # ---- local GCN branch: A_hat_rows @ (X Wg) + bg, residual, BatchNorm ----
    h_local = jnp.dot(a_ref[...], xwg_ref[...], preferred_element_type=f32)
    h_local = (h_local + bg_ref[...] + x) * BN_SCALE

    # ---- global attention branch.  Reference passes no `batch` to GPSConv,
    # so attention spans all real nodes; only padding keys are masked. --------
    valid = valid_ref[...] > 0                                     # [1, N] bool
    scale = 1.0 / math.sqrt(head_dim)
    attn = jnp.zeros_like(x)                                       # f32 [tm, C]
    for h in range(heads):                                         # static unroll
        q_h = q_ref[h]                                             # [tm, dp] bf16
        k_h = k_ref[h]                                             # [N,  dp] bf16
        v_h = v_ref[h]                                             # [N,  dp] bf16
        s = jax.lax.dot_general(q_h, k_h, (((1,), (1,)), ((), ())),
                                preferred_element_type=f32) * scale
        s = jnp.where(valid, s, NEG_INF)
        s = s - jnp.max(s, axis=-1, keepdims=True)
        p = jnp.exp(s)
        l = jnp.sum(p, axis=-1, keepdims=True)
        o_h = jnp.dot(p.astype(v_h.dtype), v_h, preferred_element_type=f32) / l
        # Per-head accumulation straight through the head-slice of Wo — no
        # lane-axis concat / relayout.
        attn = attn + jnp.dot(o_h.astype(wo_ref.dtype), wo_ref[h],
                              preferred_element_type=f32)
    h_attn = (attn + bo_ref[...] + x) * BN_SCALE

    # ---- combine + MLP + residual + BatchNorm (+ inter-layer ReLU) ----------
    out = h_local + h_attn
    m = jnp.dot(out.astype(w1_ref.dtype), w1_ref[...],
                preferred_element_type=f32) + b1_ref[...]
    m = jnp.maximum(m, 0.0)
    m = jnp.dot(m.astype(w2_ref.dtype), w2_ref[...],
                preferred_element_type=f32) + b2_ref[...]
    out = (out + m) * BN_SCALE
    if relu_out:
        out = jnp.maximum(out, 0.0)
    o_ref[...] = out.astype(o_ref.dtype)


def gps_layer_main(valid_row, x, a_norm, xwg, q, k, v, p, *,
                   heads, head_dim, tm, relu_out):
    n, c = x.shape
    dh_pad = q.shape[-1]
    in_specs = [
        _const_spec(valid_row.shape),          # [1, N] int32 key-valid row
        _row_spec(tm, c),                      # x rows
        _row_spec(tm, n),                      # normalized adjacency rows
        _const_spec(xwg.shape),                # X @ Wg (all nodes)
        _headrow_spec(heads, tm, dh_pad),      # Q rows, head-major
        _const_spec(k.shape),                  # K (all nodes), head-major
        _const_spec(v.shape),                  # V (all nodes), head-major
        _const_spec(p["bg"].shape),
        _const_spec(p["Wo"].shape),
        _const_spec(p["bo"].shape),
        _const_spec(p["W1"].shape),
        _const_spec(p["b1"].shape),
        _const_spec(p["W2"].shape),
        _const_spec(p["b2"].shape),
    ]
    # TODO(synk): at realistic N (especially v7x's 64 MiB VMEM) stream K/V and
    # the xwg/a_norm columns in chunks (inner "arbitrary" grid axis or
    # pltpu.emit_pipeline) with an online-softmax accumulator instead of full
    # residency.
    return pl.pallas_call(
        functools.partial(_gps_main_kernel, heads=heads, head_dim=head_dim,
                          relu_out=relu_out),
        out_shape=jax.ShapeDtypeStruct((n, c), jnp.bfloat16),
        grid=(n // tm,),
        in_specs=in_specs,
        out_specs=_row_spec(tm, c),
        compiler_params=_mosaic_params(("parallel",)),
    )(valid_row, x, a_norm, xwg, q, k, v,
      p["bg"], p["Wo"], p["bo"], p["W1"], p["b1"], p["W2"], p["b2"])


def _pool_classifier_kernel(pool_ref, h_ref, wl_ref, bl_ref, o_ref):
    f32 = jnp.float32
    pooled = jnp.dot(pool_ref[...], h_ref[...], preferred_element_type=f32)
    y = jnp.dot(pooled.astype(wl_ref.dtype), wl_ref[...],
                preferred_element_type=f32) + bl_ref[...]
    o_ref[...] = y


def pool_and_classify(pool_mat, h, wl_pad, bl_pad):
    g, _ = pool_mat.shape
    cpad = wl_pad.shape[1]
    return pl.pallas_call(
        _pool_classifier_kernel,
        out_shape=jax.ShapeDtypeStruct((g, cpad), jnp.float32),
        grid=(1,),
        in_specs=[_const_spec(pool_mat.shape), _const_spec(h.shape),
                  _const_spec(wl_pad.shape), _const_spec(bl_pad.shape)],
        out_specs=pl.BlockSpec((g, cpad), lambda i: (0, 0)),
        compiler_params=_mosaic_params(("arbitrary",)),
    )(pool_mat, h, wl_pad, bl_pad)


# ------------------------------- Model glue -------------------------------- #

def gcn_norm_dense(edge_index, n):
    """Dense D^{-1/2}(A + I)D^{-1/2} from a [2, E] (src, dst) edge_index."""
    # TODO(synk): at realistic N replace the dense adjacency matmul with a
    # gather/segment-sum GCN (scalar-prefetched neighbor lists); dense keeps
    # the aggregation on the MXU at this toy size.
    src, dst = edge_index[0], edge_index[1]
    a = jnp.zeros((n, n), jnp.float32).at[dst, src].set(1.0)
    a = a + jnp.eye(n, dtype=jnp.float32)
    deg = jnp.sum(a, axis=1)
    dinv = 1.0 / jnp.sqrt(deg)
    return a * dinv[:, None] * dinv[None, :]


def gps_model_forward(x, edge_index, batch, params, heads=2, tm=None):
    n_real, in_ch = x.shape
    hidden = params["gps1"]["Wg"].shape[0]
    num_graphs = int(params["num_graphs"])
    num_classes = int(params["num_classes"])
    dh_pad = params["gps1"]["Wq"].shape[-1]

    # Row tile: as large as practical (target 256, a 128-multiple).  N is
    # padded host-side to a tile multiple so no tail rows are ever dropped.
    if tm is None:
        tm = min(256, _round_up(n_real, 16))
    n_pad = _round_up(n_real, tm)

    x_p = jnp.zeros((n_pad, in_ch), jnp.bfloat16).at[:n_real].set(
        x.astype(jnp.bfloat16))
    valid_row = (jnp.arange(n_pad) < n_real).astype(jnp.int32).reshape(1, n_pad)

    a_full = jnp.zeros((n_pad, n_pad), jnp.float32)
    a_full = a_full.at[:n_real, :n_real].set(gcn_norm_dense(edge_index, n_real))
    a_full = a_full.astype(jnp.bfloat16)

    p1, p2 = params["gps1"], params["gps2"]

    # Layer 1: input_proj fused into the preproj pass, then the fused main pass.
    h, xwg, q, k, v = gps_preproj(x_p, p1, tm=tm, heads=heads, dh_pad=dh_pad,
                                  input_proj=(params["Wp"], params["bp"]))
    h = gps_layer_main(valid_row, h, a_full, xwg, q, k, v, p1,
                       heads=heads, head_dim=hidden // heads, tm=tm,
                       relu_out=True)

    # Layer 2.
    xwg, q, k, v = gps_preproj(h, p2, tm=tm, heads=heads, dh_pad=dh_pad)
    h = gps_layer_main(valid_row, h, a_full, xwg, q, k, v, p2,
                       heads=heads, head_dim=hidden // heads, tm=tm,
                       relu_out=False)

    # global_mean_pool as a [G, N_pad] averaging matrix (padding cols zero),
    # fused with the lane-padded classifier; slice the real classes here.
    onehot = (batch[:, None] == jnp.arange(num_graphs)[None, :]).astype(jnp.float32)
    counts = jnp.maximum(jnp.sum(onehot, axis=0, keepdims=True), 1.0)
    pool = jnp.zeros((num_graphs, n_pad), jnp.float32)
    pool = pool.at[:, :n_real].set((onehot / counts).T)

    out_pad = pool_and_classify(pool.astype(jnp.bfloat16), h,
                                params["Wl_pad"], params["bl_pad"])
    return out_pad[:, :num_classes]


# ---------------------------- Parameter creation ---------------------------- #

def _dense_init(key, fan_in, fan_out):
    kw, kb = jax.random.split(key)
    bound = 1.0 / (fan_in ** 0.5)
    w = jax.random.uniform(kw, (fan_in, fan_out), jnp.float32, -bound, bound)
    b = jax.random.uniform(kb, (1, fan_out), jnp.float32, -bound, bound)
    return w.astype(jnp.bfloat16), b   # bf16 MXU operands, f32 biases


def _head_major_in(w, b, heads, dh_pad):
    """[C, C] proj + [1, C] bias -> head-major, lane-padded [H, C, dp]/[H, 1, dp]."""
    c = w.shape[0]
    dh = c // heads
    w_hm = jnp.transpose(w.reshape(c, heads, dh), (1, 0, 2))
    b_hm = jnp.transpose(b.reshape(1, heads, dh), (1, 0, 2))
    pad = dh_pad - dh
    if pad:
        w_hm = jnp.pad(w_hm, ((0, 0), (0, 0), (0, pad)))
        b_hm = jnp.pad(b_hm, ((0, 0), (0, 0), (0, pad)))
    return w_hm, b_hm


def _head_major_out(w, heads, dh_pad):
    """Out-proj [C, C] -> head-sliced, sublane-padded [H, dp, C] (pad rows zero)."""
    c = w.shape[1]
    dh = w.shape[0] // heads
    w_hm = w.reshape(heads, dh, c)
    pad = dh_pad - dh
    if pad:
        w_hm = jnp.pad(w_hm, ((0, 0), (0, pad), (0, 0)))
    return w_hm


def init_gps_layer(key, c, heads, dh_pad):
    ks = jax.random.split(key, 7)
    Wg, bg = _dense_init(ks[0], c, c)            # GCNConv
    Wq_, bq_ = _dense_init(ks[1], c, c)          # MHA in_proj (q / k / v)
    Wk_, bk_ = _dense_init(ks[2], c, c)
    Wv_, bv_ = _dense_init(ks[3], c, c)
    Wo_, bo = _dense_init(ks[4], c, c)           # MHA out_proj
    W1, b1 = _dense_init(ks[5], c, 2 * c)        # GPSConv MLP
    W2, b2 = _dense_init(ks[6], 2 * c, c)
    Wq, bq = _head_major_in(Wq_, bq_, heads, dh_pad)
    Wk, bk = _head_major_in(Wk_, bk_, heads, dh_pad)
    Wv, bv = _head_major_in(Wv_, bv_, heads, dh_pad)
    Wo = _head_major_out(Wo_, heads, dh_pad)
    return dict(Wg=Wg, bg=bg, Wq=Wq, bq=bq, Wk=Wk, bk=bk, Wv=Wv, bv=bv,
                Wo=Wo, bo=bo, W1=W1, b1=b1, W2=W2, b2=b2)


def init_params(key, in_channels, hidden, num_classes, num_graphs, heads=2):
    dh_pad = max(_round_up(hidden // heads, LANE), LANE)
    ks = jax.random.split(key, 4)
    Wp, bp = _dense_init(ks[0], in_channels, hidden)
    gps1 = init_gps_layer(ks[1], hidden, heads, dh_pad)
    gps2 = init_gps_layer(ks[2], hidden, heads, dh_pad)
    Wl, bl = _dense_init(ks[3], hidden, num_classes)
    ncls_pad = max(_round_up(num_classes, LANE), LANE)   # lane-dense classifier
    Wl_pad = jnp.zeros((hidden, ncls_pad), jnp.bfloat16).at[:, :num_classes].set(Wl)
    bl_pad = jnp.zeros((1, ncls_pad), jnp.float32).at[:, :num_classes].set(bl)
    return dict(Wp=Wp, bp=bp, gps1=gps1, gps2=gps2, Wl_pad=Wl_pad, bl_pad=bl_pad,
                num_classes=num_classes, num_graphs=num_graphs)


# ---------------------------------- Main ------------------------------------ #

if __name__ == "__main__":
    N_PER_GRAPH = 16
    NUM_GRAPHS = 2
    N = N_PER_GRAPH * NUM_GRAPHS        # 32 nodes total
    IN_CH = 8
    HIDDEN = 128
    NUM_CLASSES = 4
    HEADS = 2

    key = jax.random.PRNGKey(0)
    k_x, k_p = jax.random.split(key)

    x = jax.random.normal(k_x, (N, IN_CH), jnp.float32)
    batch = jnp.repeat(jnp.arange(NUM_GRAPHS, dtype=jnp.int32), N_PER_GRAPH)

    # Undirected ring within each graph.
    src, dst = [], []
    for g in range(NUM_GRAPHS):
        off = g * N_PER_GRAPH
        for i in range(N_PER_GRAPH):
            a, b = off + i, off + (i + 1) % N_PER_GRAPH
            src += [a, b]
            dst += [b, a]
    edge_index = jnp.array([src, dst], dtype=jnp.int32)  # [2, 64]

    params = init_params(k_p, IN_CH, HIDDEN, NUM_CLASSES, NUM_GRAPHS, heads=HEADS)

    out = gps_model_forward(x, edge_index, batch, params, heads=HEADS)
    out = jax.block_until_ready(out)
    assert out.shape == (NUM_GRAPHS, NUM_CLASSES), out.shape
    assert bool(jnp.all(jnp.isfinite(out)))
    # TODO(synk): BatchNorm1d is evaluated in eval mode with fresh running
    # stats (x / sqrt(1+eps)); training-mode batch statistics and dropout RNG
    # (p=0.0 => identity) are not reproduced.
    print("KERNEL_OK")
</pallas_src>

<mosaic_0001>
module attributes {stable_mosaic.version = 11 : i64} {
  func.func @_preproj_kernel(%arg0: i32, %arg1: memref<32x8xbf16, #tpu.memory_space<vmem>>, %arg2: memref<8x128xbf16, #tpu.memory_space<vmem>>, %arg3: memref<1x128xf32, #tpu.memory_space<vmem>>, %arg4: memref<128x128xbf16, #tpu.memory_space<vmem>>, %arg5: memref<2x128x128xbf16, #tpu.memory_space<vmem>>, %arg6: memref<2x1x128xf32, #tpu.memory_space<vmem>>, %arg7: memref<2x128x128xbf16, #tpu.memory_space<vmem>>, %arg8: memref<2x1x128xf32, #tpu.memory_space<vmem>>, %arg9: memref<2x128x128xbf16, #tpu.memory_space<vmem>>, %arg10: memref<2x1x128xf32, #tpu.memory_space<vmem>>, %arg11: memref<32x128xbf16, #tpu.memory_space<vmem>>, %arg12: memref<32x128xbf16, #tpu.memory_space<vmem>>, %arg13: memref<2x32x128xbf16, #tpu.memory_space<vmem>>, %arg14: memref<2x32x128xbf16, #tpu.memory_space<vmem>>, %arg15: memref<2x32x128xbf16, #tpu.memory_space<vmem>>) attributes {dimension_semantics = [#tpu.dimension_semantics<parallel>], iteration_bounds = array<i64: 1>, scalar_prefetch = 0 : i64, scratch_operands = 0 : i64, tpu.core_type = #tpu.core_type<tc>, window_params = [{transform_indices = @transform_0, window_bounds = array<i64: 32, 8>}, {pipeline_mode = #tpu.pipeline_mode<synchronous>, transform_indices = @transform_1, window_bounds = array<i64: 8, 128>}, {pipeline_mode = #tpu.pipeline_mode<synchronous>, transform_indices = @transform_2, window_bounds = array<i64: 1, 128>}, {pipeline_mode = #tpu.pipeline_mode<synchronous>, transform_indices = @transform_3, window_bounds = array<i64: 128, 128>}, {pipeline_mode = #tpu.pipeline_mode<synchronous>, transform_indices = @transform_4, window_bounds = array<i64: 2, 128, 128>}, {pipeline_mode = #tpu.pipeline_mode<synchronous>, transform_indices = @transform_5, window_bounds = array<i64: 2, 1, 128>}, {pipeline_mode = #tpu.pipeline_mode<synchronous>, transform_indices = @transform_6, window_bounds = array<i64: 2, 128, 128>}, {pipeline_mode = #tpu.pipeline_mode<synchronous>, transform_indices = @transform_7, window_bounds = array<i64: 2, 1, 128>}, {pipeline_mode = #tpu.pipeline_mode<synchronous>, transform_indices = @transform_8, window_bounds = array<i64: 2, 128, 128>}, {pipeline_mode = #tpu.pipeline_mode<synchronous>, transform_indices = @transform_9, window_bounds = array<i64: 2, 1, 128>}, {transform_indices = @transform_10, window_bounds = array<i64: 32, 128>}, {transform_indices = @transform_11, window_bounds = array<i64: 32, 128>}, {transform_indices = @transform_12, window_bounds = array<i64: 2, 32, 128>}, {transform_indices = @transform_13, window_bounds = array<i64: 2, 32, 128>}, {transform_indices = @transform_14, window_bounds = array<i64: 2, 32, 128>}]} {
    %c0 = arith.constant 0 : index
    %c0_0 = arith.constant 0 : index
    %0 = vector.load %arg1[%c0, %c0_0] : memref<32x8xbf16, #tpu.memory_space<vmem>>, vector<32x8xbf16>
    %c0_1 = arith.constant 0 : index
    %c0_2 = arith.constant 0 : index
    %1 = vector.load %arg2[%c0_1, %c0_2] : memref<8x128xbf16, #tpu.memory_space<vmem>>, vector<8x128xbf16>
    %cst = arith.constant dense<0.000000e+00> : vector<32x128xf32>
    %2 = tpu.matmul %0, %1, %cst {dimension_numbers = #tpu.dot_dimension_numbers<[1], [0], [0], [1], [0, 0, 1, 1], [], []>} : vector<32x8xbf16>, vector<8x128xbf16>, vector<32x128xf32> -> vector<32x128xf32>
    %c0_3 = arith.constant 0 : index
    %c0_4 = arith.constant 0 : index
    %3 = vector.load %arg3[%c0_3, %c0_4] : memref<1x128xf32, #tpu.memory_space<vmem>>, vector<1x128xf32>
    %4 = vector.broadcast %3 : vector<1x128xf32> to vector<32x128xf32>
    %5 = arith.addf %2, %4 : vector<32x128xf32>
    %6 = arith.truncf %5 : vector<32x128xf32> to vector<32x128xbf16>
    %c0_5 = arith.constant 0 : index
    %c0_6 = arith.constant 0 : index
    %7 = vector.load %arg11[%c0_5, %c0_6] : memref<32x128xbf16, #tpu.memory_space<vmem>>, vector<32x128xbf16>
    tpu.vector_store %arg11[%c0_5, %c0_6], %6 {strides = array<i32>} : memref<32x128xbf16, #tpu.memory_space<vmem>>, vector<32x128xbf16>,
    %c0_7 = arith.constant 0 : index
    %c0_8 = arith.constant 0 : index
    %8 = vector.load %arg4[%c0_7, %c0_8] : memref<128x128xbf16, #tpu.memory_space<vmem>>, vector<128x128xbf16>
    %cst_9 = arith.constant dense<0.000000e+00> : vector<32x128xf32>
    %9 = tpu.matmul %6, %8, %cst_9 {dimension_numbers = #tpu.dot_dimension_numbers<[1], [0], [0], [1], [0, 0, 1, 1], [], []>} : vector<32x128xbf16>, vector<128x128xbf16>, vector<32x128xf32> -> vector<32x128xf32>
    %10 = arith.truncf %9 : vector<32x128xf32> to vector<32x128xbf16>
    %c0_10 = arith.constant 0 : index
    %c0_11 = arith.constant 0 : index
    %11 = vector.load %arg12[%c0_10, %c0_11] : memref<32x128xbf16, #tpu.memory_space<vmem>>, vector<32x128xbf16>
    tpu.vector_store %arg12[%c0_10, %c0_11], %10 {strides = array<i32>} : memref<32x128xbf16, #tpu.memory_space<vmem>>, vector<32x128xbf16>,
    %c0_12 = arith.constant 0 : index
    %c0_13 = arith.constant 0 : index
    %c0_14 = arith.constant 0 : index
    %12 = vector.load %arg5[%c0_12, %c0_13, %c0_14] : memref<2x128x128xbf16, #tpu.memory_space<vmem>>, vector<1x128x128xbf16>
    %13 = vector.shape_cast %12 : vector<1x128x128xbf16> to vector<128x128xbf16>
    %cst_15 = arith.constant dense<0.000000e+00> : vector<32x128xf32>
    %14 = tpu.matmul %6, %13, %cst_15 {dimension_numbers = #tpu.dot_dimension_numbers<[1], [0], [0], [1], [0, 0, 1, 1], [], []>} : vector<32x128xbf16>, vector<128x128xbf16>, vector<32x128xf32> -> vector<32x128xf32>
    %c0_16 = arith.constant 0 : index
    %c0_17 = arith.constant 0 : index
    %c0_18 = arith.constant 0 : index
    %15 = vector.load %arg6[%c0_16, %c0_17, %c0_18] : memref<2x1x128xf32, #tpu.memory_space<vmem>>, vector<1x1x128xf32>
    %16 = vector.shape_cast %15 : vector<1x1x128xf32> to vector<1x128xf32>
    %17 = vector.broadcast %16 : vector<1x128xf32> to vector<32x128xf32>
    %18 = arith.addf %14, %17 : vector<32x128xf32>
    %19 = arith.truncf %18 : vector<32x128xf32> to vector<32x128xbf16>
    %c0_19 = arith.constant 0 : index
    %c0_20 = arith.constant 0 : index
    %c0_21 = arith.constant 0 : index
    %20 = vector.load %arg13[%c0_19, %c0_20, %c0_21] : memref<2x32x128xbf16, #tpu.memory_space<vmem>>, vector<1x32x128xbf16>
    %21 = vector.shape_cast %20 : vector<1x32x128xbf16> to vector<32x128xbf16>
    %22 = vector.shape_cast %19 : vector<32x128xbf16> to vector<1x32x128xbf16>
    tpu.vector_store %arg13[%c0_19, %c0_20, %c0_21], %22 {strides = array<i32>} : memref<2x32x128xbf16, #tpu.memory_space<vmem>>, vector<1x32x128xbf16>,
    %c0_22 = arith.constant 0 : index
    %c0_23 = arith.constant 0 : index
    %c0_24 = arith.constant 0 : index
    %23 = vector.load %arg7[%c0_22, %c0_23, %c0_24] : memref<2x128x128xbf16, #tpu.memory_space<vmem>>, vector<1x128x128xbf16>
    %24 = vector.shape_cast %23 : vector<1x128x128xbf16> to vector<128x128xbf16>
    %cst_25 = arith.constant dense<0.000000e+00> : vector<32x128xf32>
    %25 = tpu.matmul %6, %24, %cst_25 {dimension_numbers = #tpu.dot_dimension_numbers<[1], [0], [0], [1], [0, 0, 1, 1], [], []>} : vector<32x128xbf16>, vector<128x128xbf16>, vector<32x128xf32> -> vector<32x128xf32>
    %c0_26 = arith.constant 0 : index
    %c0_27 = arith.constant 0 : index
    %c0_28 = arith.constant 0 : index
    %26 = vector.load %arg8[%c0_26, %c0_27, %c0_28] : memref<2x1x128xf32, #tpu.memory_space<vmem>>, vector<1x1x128xf32>
    %27 = vector.shape_cast %26 : vector<1x1x128xf32> to vector<1x128xf32>
    %28 = vector.broadcast %27 : vector<1x128xf32> to vector<32x128xf32>
    %29 = arith.addf %25, %28 : vector<32x128xf32>
    %30 = arith.truncf %29 : vector<32x128xf32> to vector<32x128xbf16>
    %c0_29 = arith.constant 0 : index
    %c0_30 = arith.constant 0 : index
    %c0_31 = arith.constant 0 : index
    %31 = vector.load %arg14[%c0_29, %c0_30, %c0_31] : memref<2x32x128xbf16, #tpu.memory_space<vmem>>, vector<1x32x128xbf16>
    %32 = vector.shape_cast %31 : vector<1x32x128xbf16> to vector<32x128xbf16>
    %33 = vector.shape_cast %30 : vector<32x128xbf16> to vector<1x32x128xbf16>
    tpu.vector_store %arg14[%c0_29, %c0_30, %c0_31], %33 {strides = array<i32>} : memref<2x32x128xbf16, #tpu.memory_space<vmem>>, vector<1x32x128xbf16>,
    %c0_32 = arith.constant 0 : index
    %c0_33 = arith.constant 0 : index
    %c0_34 = arith.constant 0 : index
    %34 = vector.load %arg9[%c0_32, %c0_33, %c0_34] : memref<2x128x128xbf16, #tpu.memory_space<vmem>>, vector<1x128x128xbf16>
    %35 = vector.shape_cast %34 : vector<1x128x128xbf16> to vector<128x128xbf16>
    %cst_35 = arith.constant dense<0.000000e+00> : vector<32x128xf32>
    %36 = tpu.matmul %6, %35, %cst_35 {dimension_numbers = #tpu.dot_dimension_numbers<[1], [0], [0], [1], [0, 0, 1, 1], [], []>} : vector<32x128xbf16>, vector<128x128xbf16>, vector<32x128xf32> -> vector<32x128xf32>
    %c0_36 = arith.constant 0 : index
    %c0_37 = arith.constant 0 : index
    %c0_38 = arith.constant 0 : index
    %37 = vector.load %arg10[%c0_36, %c0_37, %c0_38] : memref<2x1x128xf32, #tpu.memory_space<vmem>>, vector<1x1x128xf32>
    %38 = vector.shape_cast %37 : vector<1x1x128xf32> to vector<1x128xf32>
    %39 = vector.broadcast %38 : vector<1x128xf32> to vector<32x128xf32>
    %40 = arith.addf %36, %39 : vector<32x128xf32>
    %41 = arith.truncf %40 : vector<32x128xf32> to vector<32x128xbf16>
    %c0_39 = arith.constant 0 : index
    %c0_40 = arith.constant 0 : index
    %c0_41 = arith.constant 0 : index
    %42 = vector.load %arg15[%c0_39, %c0_40, %c0_41] : memref<2x32x128xbf16, #tpu.memory_space<vmem>>, vector<1x32x128xbf16>
    %43 = vector.shape_cast %42 : vector<1x32x128xbf16> to vector<32x128xbf16>
    %44 = vector.shape_cast %41 : vector<32x128xbf16> to vector<1x32x128xbf16>
    tpu.vector_store %arg15[%c0_39, %c0_40, %c0_41], %44 {strides = array<i32>} : memref<2x32x128xbf16, #tpu.memory_space<vmem>>, vector<1x32x128xbf16>,
    %c1 = arith.constant 1 : index
    %c0_42 = arith.constant 0 : index
    %c0_43 = arith.constant 0 : index
    %45 = vector.load %arg5[%c1, %c0_42, %c0_43] : memref<2x128x128xbf16, #tpu.memory_space<vmem>>, vector<1x128x128xbf16>
    %46 = vector.shape_cast %45 : vector<1x128x128xbf16> to vector<128x128xbf16>
    %cst_44 = arith.constant dense<0.000000e+00> : vector<32x128xf32>
    %47 = tpu.matmul %6, %46, %cst_44 {dimension_numbers = #tpu.dot_dimension_numbers<[1], [0], [0], [1], [0, 0, 1, 1], [], []>} : vector<32x128xbf16>, vector<128x128xbf16>, vector<32x128xf32> -> vector<32x128xf32>
    %c1_45 = arith.constant 1 : index
    %c0_46 = arith.constant 0 : index
    %c0_47 = arith.constant 0 : index
    %48 = vector.load %arg6[%c1_45, %c0_46, %c0_47] : memref<2x1x128xf32, #tpu.memory_space<vmem>>, vector<1x1x128xf32>
    %49 = vector.shape_cast %48 : vector<1x1x128xf32> to vector<1x128xf32>
    %50 = vector.broadcast %49 : vector<1x128xf32> to vector<32x128xf32>
    %51 = arith.addf %47, %50 : vector<32x128xf32>
    %52 = arith.truncf %51 : vector<32x128xf32> to vector<32x128xbf16>
    %c1_48 = arith.constant 1 : index
    %c0_49 = arith.constant 0 : index
    %c0_50 = arith.constant 0 : index
    %53 = vector.load %arg13[%c1_48, %c0_49, %c0_50] : memref<2x32x128xbf16, #tpu.memory_space<vmem>>, vector<1x32x128xbf16>
    %54 = vector.shape_cast %53 : vector<1x32x128xbf16> to vector<32x128xbf16>
    %55 = vector.shape_cast %52 : vector<32x128xbf16> to vector<1x32x128xbf16>
    tpu.vector_store %arg13[%c1_48, %c0_49, %c0_50], %55 {strides = array<i32>} : memref<2x32x128xbf16, #tpu.memory_space<vmem>>, vector<1x32x128xbf16>,
    %c1_51 = arith.constant 1 : index
    %c0_52 = arith.constant 0 : index
    %c0_53 = arith.constant 0 : index
    %56 = vector.load %arg7[%c1_51, %c0_52, %c0_53] : memref<2x128x128xbf16, #tpu.memory_space<vmem>>, vector<1x128x128xbf16>
    %57 = vector.shape_cast %56 : vector<1x128x128xbf16> to vector<128x128xbf16>
    %cst_54 = arith.constant dense<0.000000e+00> : vector<32x128xf32>
    %58 = tpu.matmul %6, %57, %cst_54 {dimension_numbers = #tpu.dot_dimension_numbers<[1], [0], [0], [1], [0, 0, 1, 1], [], []>} : vector<32x128xbf16>, vector<128x128xbf16>, vector<32x128xf32> -> vector<32x128xf32>
    %c1_55 = arith.constant 1 : index
    %c0_56 = arith.constant 0 : index
    %c0_57 = arith.constant 0 : index
    %59 = vector.load %arg8[%c1_55, %c0_56, %c0_57] : memref<2x1x128xf32, #tpu.memory_space<vmem>>, vector<1x1x128xf32>
    %60 = vector.shape_cast %59 : vector<1x1x128xf32> to vector<1x128xf32>
    %61 = vector.broadcast %60 : vector<1x128xf32> to vector<32x128xf32>
    %62 = arith.addf %58, %61 : vector<32x128xf32>
    %63 = arith.truncf %62 : vector<32x128xf32> to vector<32x128xbf16>
    %c1_58 = arith.constant 1 : index
    %c0_59 = arith.constant 0 : index
    %c0_60 = arith.constant 0 : index
    %64 = vector.load %arg14[%c1_58, %c0_59, %c0_60] : memref<2x32x128xbf16, #tpu.memory_space<vmem>>, vector<1x32x128xbf16>
    %65 = vector.shape_cast %64 : vector<1x32x128xbf16> to vector<32x128xbf16>
    %66 = vector.shape_cast %63 : vector<32x128xbf16> to vector<1x32x128xbf16>
    tpu.vector_store %arg14[%c1_58, %c0_59, %c0_60], %66 {strides = array<i32>} : memref<2x32x128xbf16, #tpu.memory_space<vmem>>, vector<1x32x128xbf16>,
    %c1_61 = arith.constant 1 : index
    %c0_62 = arith.constant 0 : index
    %c0_63 = arith.constant 0 : index
    %67 = vector.load %arg9[%c1_61, %c0_62, %c0_63] : memref<2x128x128xbf16, #tpu.memory_space<vmem>>, vector<1x128x128xbf16>
    %68 = vector.shape_cast %67 : vector<1x128x128xbf16> to vector<128x128xbf16>
    %cst_64 = arith.constant dense<0.000000e+00> : vector<32x128xf32>
    %69 = tpu.matmul %6, %68, %cst_64 {dimension_numbers = #tpu.dot_dimension_numbers<[1], [0], [0], [1], [0, 0, 1, 1], [], []>} : vector<32x128xbf16>, vector<128x128xbf16>, vector<32x128xf32> -> vector<32x128xf32>
    %c1_65 = arith.constant 1 : index
    %c0_66 = arith.constant 0 : index
    %c0_67 = arith.constant 0 : index
    %70 = vector.load %arg10[%c1_65, %c0_66, %c0_67] : memref<2x1x128xf32, #tpu.memory_space<vmem>>, vector<1x1x128xf32>
    %71 = vector.shape_cast %70 : vector<1x1x128xf32> to vector<1x128xf32>
    %72 = vector.broadcast %71 : vector<1x128xf32> to vector<32x128xf32>
    %73 = arith.addf %69, %72 : vector<32x128xf32>
    %74 = arith.truncf %73 : vector<32x128xf32> to vector<32x128xbf16>
    %c1_68 = arith.constant 1 : index
    %c0_69 = arith.constant 0 : index
    %c0_70 = arith.constant 0 : index
    %75 = vector.load %arg15[%c1_68, %c0_69, %c0_70] : memref<2x32x128xbf16, #tpu.memory_space<vmem>>, vector<1x32x128xbf16>
    %76 = vector.shape_cast %75 : vector<1x32x128xbf16> to vector<32x128xbf16>
    %77 = vector.shape_cast %74 : vector<32x128xbf16> to vector<1x32x128xbf16>
    tpu.vector_store %arg15[%c1_68, %c0_69, %c0_70], %77 {strides = array<i32>} : memref<2x32x128xbf16, #tpu.memory_space<vmem>>, vector<1x32x128xbf16>,
    return
  }
  func.func @transform_0(%arg0: i32) -> (i32, i32) {
    %c0_i32 = arith.constant 0 : i32
    %c0_i32_0 = arith.constant 0 : i32
    return %arg0, %c0_i32 : i32, i32
  }
  func.func @transform_1(%arg0: i32) -> (i32, i32) {
    %c0_i32 = arith.constant 0 : i32
    %c0_i32_0 = arith.constant 0 : i32
    %c0_i32_1 = arith.constant 0 : i32
    return %c0_i32, %c0_i32_0 : i32, i32
  }
  func.func @transform_2(%arg0: i32) -> (i32, i32) {
    %c0_i32 = arith.constant 0 : i32
    %c0_i32_0 = arith.constant 0 : i32
    %c0_i32_1 = arith.constant 0 : i32
    return %c0_i32, %c0_i32_0 : i32, i32
  }
  func.func @transform_3(%arg0: i32) -> (i32, i32) {
    %c0_i32 = arith.constant 0 : i32
    %c0_i32_0 = arith.constant 0 : i32
    %c0_i32_1 = arith.constant 0 : i32
    return %c0_i32, %c0_i32_0 : i32, i32
  }
  func.func @transform_4(%arg0: i32) -> (i32, i32, i32) {
    %c0_i32 = arith.constant 0 : i32
    %c0_i32_0 = arith.constant 0 : i32
    %c0_i32_1 = arith.constant 0 : i32
    %c0_i32_2 = arith.constant 0 : i32
    return %c0_i32, %c0_i32_0, %c0_i32_1 : i32, i32, i32
  }
  func.func @transform_5(%arg0: i32) -> (i32, i32, i32) {
    %c0_i32 = arith.constant 0 : i32
    %c0_i32_0 = arith.constant 0 : i32
    %c0_i32_1 = arith.constant 0 : i32
    %c0_i32_2 = arith.constant 0 : i32
    return %c0_i32, %c0_i32_0, %c0_i32_1 : i32, i32, i32
  }
  func.func @transform_6(%arg0: i32) -> (i32, i32, i32) {
    %c0_i32 = arith.constant 0 : i32
    %c0_i32_0 = arith.constant 0 : i32
    %c0_i32_1 = arith.constant 0 : i32
    %c0_i32_2 = arith.constant 0 : i32
    return %c0_i32, %c0_i32_0, %c0_i32_1 : i32, i32, i32
  }
  func.func @transform_7(%arg0: i32) -> (i32, i32, i32) {
    %c0_i32 = arith.constant 0 : i32
    %c0_i32_0 = arith.constant 0 : i32
    %c0_i32_1 = arith.constant 0 : i32
    %c0_i32_2 = arith.constant 0 : i32
    return %c0_i32, %c0_i32_0, %c0_i32_1 : i32, i32, i32
  }
  func.func @transform_8(%arg0: i32) -> (i32, i32, i32) {
    %c0_i32 = arith.constant 0 : i32
    %c0_i32_0 = arith.constant 0 : i32
    %c0_i32_1 = arith.constant 0 : i32
    %c0_i32_2 = arith.constant 0 : i32
    return %c0_i32, %c0_i32_0, %c0_i32_1 : i32, i32, i32
  }
  func.func @transform_9(%arg0: i32) -> (i32, i32, i32) {
    %c0_i32 = arith.constant 0 : i32
    %c0_i32_0 = arith.constant 0 : i32
    %c0_i32_1 = arith.constant 0 : i32
    %c0_i32_2 = arith.constant 0 : i32
    return %c0_i32, %c0_i32_0, %c0_i32_1 : i32, i32, i32
  }
  func.func @transform_10(%arg0: i32) -> (i32, i32) {
    %c0_i32 = arith.constant 0 : i32
    %c0_i32_0 = arith.constant 0 : i32
    return %arg0, %c0_i32 : i32, i32
  }
  func.func @transform_11(%arg0: i32) -> (i32, i32) {
    %c0_i32 = arith.constant 0 : i32
    %c0_i32_0 = arith.constant 0 : i32
    return %arg0, %c0_i32 : i32, i32
  }
  func.func @transform_12(%arg0: i32) -> (i32, i32, i32) {
    %c0_i32 = arith.constant 0 : i32
    %c0_i32_0 = arith.constant 0 : i32
    %c0_i32_1 = arith.constant 0 : i32
    return %c0_i32, %arg0, %c0_i32_0 : i32, i32, i32
  }
  func.func @transform_13(%arg0: i32) -> (i32, i32, i32) {
    %c0_i32 = arith.constant 0 : i32
    %c0_i32_0 = arith.constant 0 : i32
    %c0_i32_1 = arith.constant 0 : i32
    return %c0_i32, %arg0, %c0_i32_0 : i32, i32, i32
  }
  func.func @transform_14(%arg0: i32) -> (i32, i32, i32) {
    %c0_i32 = arith.constant 0 : i32
    %c0_i32_0 = arith.constant 0 : i32
    %c0_i32_1 = arith.constant 0 : i32
    return %c0_i32, %arg0, %c0_i32_0 : i32, i32, i32
  }
}

</mosaic_0001>

<llo_original>
// kernel: tpu_custom_call.1
$region0: #{tpu_custom_call.1}
  #allocation0 [shape = 'u32[]', space=smem, size = 0x4, offset = 0x4, fixed_abs, tag = 'smem constant byte address 0x4 - core index']
  #allocation1 [shape = 'u32[72,128]{1,0:T(1,128)}', space=vmem, size = 0x9000, scoped, tag = 'internal scratch']
  %s0 = inlined_call_operand.vmem [shape: bf16[32,8], index: 0, kind: input, shape index: {}]
  %s1 = inlined_call_operand.vmem [shape: bf16[8,128], index: 1, kind: input, shape index: {}]
  %s2 = inlined_call_operand.vmem [shape: f32[1,128], index: 2, kind: input, shape index: {}]
  %s3 = inlined_call_operand.hbm [shape: bf16[128,128], index: 3, kind: input, shape index: {}]
  %s4 = inlined_call_operand.hbm [shape: bf16[2,128,128], index: 4, kind: input, shape index: {}]
  %s5 = inlined_call_operand.vmem [shape: f32[2,1,128], index: 5, kind: input, shape index: {}]
  %s6 = inlined_call_operand.hbm [shape: bf16[2,128,128], index: 6, kind: input, shape index: {}]
  %s7 = inlined_call_operand.vmem [shape: f32[2,1,128], index: 7, kind: input, shape index: {}]
  %s8 = inlined_call_operand.hbm [shape: bf16[2,128,128], index: 8, kind: input, shape index: {}]
  %s9 = inlined_call_operand.vmem [shape: f32[2,1,128], index: 9, kind: input, shape index: {}]
  %s10 = inlined_call_operand.hbm [shape: bf16[32,128], index: 10, kind: output, shape index: {0}]
  %s11 = inlined_call_operand.hbm [shape: bf16[32,128], index: 11, kind: output, shape index: {1}]
  %s12 = inlined_call_operand.hbm [shape: bf16[2,32,128], index: 12, kind: output, shape index: {2}]
  %s13 = inlined_call_operand.hbm [shape: bf16[2,32,128], index: 13, kind: output, shape index: {3}]
  %s14 = inlined_call_operand.hbm [shape: bf16[2,32,128], index: 14, kind: output, shape index: {4}]
  %15 = xla_tuple %s10, %s11, %s12, %s13, %s14
  %s16 = sld [smem:[#allocation0]]
  $region98: #{tpu_custom_call.1} parent=0
    _
  %s18 = ssub.s32 1, %s16
  %s19 = scalar_select 0, %s18, %s16
  $region1: #{tpu_custom_call.1} parent=0
    #allocation2 [shape = 'u8[32768]{0}', space=vmem, size = 0x8000, scoped, tag = 'input window, operand 3, single buffered']
    #allocation3 [shape = 's32[1]{0}', space=sflag, size = 0x4, scoped, tag = 'scoped memory for tpu_custom_call.1']
    #allocation4 [shape = 's32[1]{0}', space=sflag, size = 0x4, scoped, tag = 'scoped memory for tpu_custom_call.1']
    #allocation5 [shape = 'u8[65536]{0}', space=vmem, size = 0x10000, scoped, tag = 'input window, operand 4, single buffered']
    #allocation6 [shape = 's32[1]{0}', space=sflag, size = 0x4, scoped, tag = 'scoped memory for tpu_custom_call.1']
    #allocation7 [shape = 'u8[65536]{0}', space=vmem, size = 0x10000, scoped, tag = 'input window, operand 6, single buffered']
    #allocation8 [shape = 'u8[65536]{0}', space=vmem, size = 0x10000, scoped, tag = 'input window, operand 8, single buffered']
    #allocation9 [shape = 's32[1]{0}', space=sflag, size = 0x4, scoped, tag = 'scoped memory for tpu_custom_call.1']
    #allocation10 [shape = 'u8[8192]{0}', space=vmem, size = 0x2000, scoped, tag = 'output window, operand 0, single buffered']
    #allocation11 [shape = 'u8[8192]{0}', space=vmem, size = 0x2000, scoped, tag = 'output window, operand 1, single buffered']
    #allocation12 [shape = 's32[1]{0}', space=sflag, size = 0x4, scoped, tag = 'scoped memory for tpu_custom_call.1']
    #allocation13 [shape = 'u8[16384]{0}', space=vmem, size = 0x4000, scoped, tag = 'output window, operand 2, single buffered']
    #allocation14 [shape = 'u8[16384]{0}', space=vmem, size = 0x4000, scoped, tag = 'output window, operand 3, single buffered']
    #allocation15 [shape = 's32[1]{0}', space=sflag, size = 0x4, scoped, tag = 'scoped memory for tpu_custom_call.1']
    #allocation16 [shape = 'u8[16384]{0}', space=vmem, size = 0x4000, scoped, tag = 'output window, operand 4, single buffered']
    %20 = vsyncpa [#allocation3], 0
    %21 = vsyncpa [#allocation6], 0
    %22 = vsyncpa [#allocation9], 0
    %23 = vsyncpa [#allocation4], 0
    %24 = vsyncpa [#allocation12], 0
    %25 = vsyncpa [#allocation15], 0
    // Predicated region
    $region2: #{tpu_custom_call.1} parent=1 // pred_check
      _
    $region3: #{tpu_custom_call.1} parent=1 // pred_check_branch
      %27 = sbr.rel (0) target = $region5
    $region4: #{tpu_custom_call.1} parent=1 // pred_region
      _
    $region5: #{tpu_custom_call.1} parent=1 // pred_fallthru
      _
    // Predicated region
    $region6: #{tpu_custom_call.1} parent=1 // pred_check
      _
    $region7: #{tpu_custom_call.1} parent=1 // pred_check_branch
      %29 = sbr.rel (0) target = $region9
    $region8: #{tpu_custom_call.1} parent=1 // pred_region
      _
    $region9: #{tpu_custom_call.1} parent=1 // pred_fallthru
      _
    // Predicated region
    $region10: #{tpu_custom_call.1} parent=1 // pred_check
      _
    $region11: #{tpu_custom_call.1} parent=1 // pred_check_branch
      %31 = sbr.rel (0) target = $region13
    $region12: #{tpu_custom_call.1} parent=1 // pred_region
      _
    $region13: #{tpu_custom_call.1} parent=1 // pred_fallthru
      _
    // Predicated region
    $region14: #{tpu_custom_call.1} parent=1 // pred_check
      _
    $region15: #{tpu_custom_call.1} parent=1 // pred_check_branch
      %33 = sbr.rel (0) target = $region17
    $region16: #{tpu_custom_call.1} parent=1 // pred_region
      %35 = vsyncadd [#allocation3], 0
      %s36 = sshll.u32 %s3, 4
      %s37 = int_to_ptr.hbm [resolvable:$true] %s36
      %s38 = sshll.u32 [#allocation2], 4
      %s39 = int_to_ptr.vmem [resolvable:$true] %s38
      %44 = dma.hbm_to_vmem [thread:$0]  %s37, 1024, %s39, [#allocation3], 64, 64, 4
    $region17: #{tpu_custom_call.1} parent=1 // pred_fallthru
      _
    // Predicated region
    $region18: #{tpu_custom_call.1} parent=1 // pred_check
      _
    $region19: #{tpu_custom_call.1} parent=1 // pred_check_branch
      %46 = sbr.rel (0) target = $region21
    $region20: #{tpu_custom_call.1} parent=1 // pred_region
      %48 = vsyncadd [#allocation6], 0
      %s49 = sshll.u32 %s4, 4
      %s50 = int_to_ptr.hbm [resolvable:$true] %s49
      %s51 = sshll.u32 [#allocation5], 4
      %s52 = int_to_ptr.vmem [resolvable:$true] %s51
      %57 = dma.hbm_to_vmem [thread:$0]  %s50, 2048, %s52, [#allocation6], 64, 64, 4
    $region21: #{tpu_custom_call.1} parent=1 // pred_fallthru
      _
    // Predicated region
    $region22: #{tpu_custom_call.1} parent=1 // pred_check
      _
    $region23: #{tpu_custom_call.1} parent=1 // pred_check_branch
      %59 = sbr.rel (0) target = $region25
    $region24: #{tpu_custom_call.1} parent=1 // pred_region
      _
    $region25: #{tpu_custom_call.1} parent=1 // pred_fallthru
      _
    // Predicated region
    $region26: #{tpu_custom_call.1} parent=1 // pred_check
      _
    $region27: #{tpu_custom_call.1} parent=1 // pred_check_branch
      %61 = sbr.rel (0) target = $region29
    $region28: #{tpu_custom_call.1} parent=1 // pred_region
      %63 = vsyncadd [#allocation6], 0
      %s64 = sshll.u32 %s6, 4
      %s65 = int_to_ptr.hbm [resolvable:$true] %s64
      %s66 = sshll.u32 [#allocation7], 4
      %s67 = int_to_ptr.vmem [resolvable:$true] %s66
      %72 = dma.hbm_to_vmem [thread:$0]  %s65, 2048, %s67, [#allocation6], 64, 64, 4
    $region29: #{tpu_custom_call.1} parent=1 // pred_fallthru
      _
    // Predicated region
    $region30: #{tpu_custom_call.1} parent=1 // pred_check
      _
    $region31: #{tpu_custom_call.1} parent=1 // pred_check_branch
      %74 = sbr.rel (0) target = $region33
    $region32: #{tpu_custom_call.1} parent=1 // pred_region
      _
    $region33: #{tpu_custom_call.1} parent=1 // pred_fallthru
      _
    // Predicated region
    $region34: #{tpu_custom_call.1} parent=1 // pred_check
      _
    $region35: #{tpu_custom_call.1} parent=1 // pred_check_branch
      %76 = sbr.rel (0) target = $region37
    $region36: #{tpu_custom_call.1} parent=1 // pred_region
      %78 = vsyncadd [#allocation9], 0
      %s79 = sshll.u32 %s8, 4
      %s80 = int_to_ptr.hbm [resolvable:$true] %s79
      %s81 = sshll.u32 [#allocation8], 4
      %s82 = int_to_ptr.vmem [resolvable:$true] %s81
      %87 = dma.hbm_to_vmem [thread:$0]  %s80, 2048, %s82, [#allocation9], 64, 64, 4
    $region37: #{tpu_custom_call.1} parent=1 // pred_fallthru
      _
    // Predicated region
    $region38: #{tpu_custom_call.1} parent=1 // pred_check
      _
    $region39: #{tpu_custom_call.1} parent=1 // pred_check_branch
      %89 = sbr.rel (0) target = $region41
    $region40: #{tpu_custom_call.1} parent=1 // pred_region
      _
    $region41: #{tpu_custom_call.1} parent=1 // pred_fallthru
      _
    // Predicated region
    $region42: #{tpu_custom_call.1} parent=1 // pred_check
      _
    $region43: #{tpu_custom_call.1} parent=1 // pred_check_branch
      %91 = sbr.rel (0) target = $region45
    $region44: #{tpu_custom_call.1} parent=1 // pred_region
      %93 = dma.done [#allocation3], 1024
    $region45: #{tpu_custom_call.1} parent=1 // pred_fallthru
      _
    // Predicated region
    $region46: #{tpu_custom_call.1} parent=1 // pred_check
      _
    $region47: #{tpu_custom_call.1} parent=1 // pred_check_branch
      %95 = sbr.rel (0) target = $region49
    $region48: #{tpu_custom_call.1} parent=1 // pred_region
      %97 = dma.done [#allocation6], 2048
    $region49: #{tpu_custom_call.1} parent=1 // pred_fallthru
      _
    // Predicated region
    $region50: #{tpu_custom_call.1} parent=1 // pred_check
      _
    $region51: #{tpu_custom_call.1} parent=1 // pred_check_branch
      %99 = sbr.rel (0) target = $region53
    $region52: #{tpu_custom_call.1} parent=1 // pred_region
      %101 = dma.done [#allocation6], 2048
    $region53: #{tpu_custom_call.1} parent=1 // pred_fallthru
      _
    // Predicated region
    $region54: #{tpu_custom_call.1} parent=1 // pred_check
      _
    $region55: #{tpu_custom_call.1} parent=1 // pred_check_branch
      %103 = sbr.rel (0) target = $region57
    $region56: #{tpu_custom_call.1} parent=1 // pred_region
      %105 = dma.done [#allocation9], 2048
    $region57: #{tpu_custom_call.1} parent=1 // pred_fallthru
      _
    %v107 = vld [vmem:[%s0] sm:$0xf]
    %v108 = vld [vmem:[%s0 + $0x4] sm:$0xf]
    %v109 = vld [vmem:[%s0 + $0x8] sm:$0xf]
    %v110 = vld [vmem:[%s0 + $0xc] sm:$0xf]
    %v111 = vld [vmem:[%s1] sm:$0xf]
    %v112 = vld [vmem:[%s2] sm:$0x1]
    %v114 = vperm.slane %v112, 0
    %v120 = vunpack.c.l.b16 %v107
    %v121 = vunpack.c.l.b16 %v108
    %v122 = vunpack.c.l.b16 %v109
    %v123 = vunpack.c.l.b16 %v110
    %v124 = vpack.c.b16 %v121, %v120
    %v125 = vpack.c.b16 %v123, %v122
    %vm126 = vcmask 64512
    %v128 = vsel %vm126, %v124, 0
    %v131 = vsel %vm126, %v125, 0
    %vm133 = vcmask 1043456
    %v135 = vsel %vm133, %v111, 0
    %137 = vmatpush.bf16.msra.mxu0 0
    %138 = vmatpush.bf16.msra.mxu0 0
    %139 = vmatpush.bf16.msra.mxu0 0
    %140 = vmatpush.bf16.msra.mxu0 0
    %141 = vmatpush.bf16.msra.mxu0 0
    %142 = vmatpush.bf16.msra.mxu0 0
    %143 = vmatpush.bf16.msra.mxu0 0
    %144 = vmatpush.bf16.msra.mxu0 %v135
    %145 = vmatmul.bf16.gmra.mxu0 %v128
    %v146 = vpop.f32.mrf.mxu0
    %v147 = vadd.f32 %v114, %v146
    %v148 = vpop.f32.mrf.mxu0
    %v149 = vadd.f32 %v114, %v148
    %150 = vmatmul.bf16.gmra.mxu0 %v131
    %v151 = vpop.f32.mrf.mxu0
    %v152 = vadd.f32 %v114, %v151
    %v153 = vpop.f32.mrf.mxu0
    %v154 = vadd.f32 %v114, %v153
    %155 = vdwg.mxu0
    %v156 = vpack.c.bf16 %v147, %v147
    %v157 = vpack.c.bf16 %v149, %v149
    %v158 = vpack.c.bf16 %v152, %v152
    %v159 = vpack.c.bf16 %v154, %v154
    %160 = vst [vmem:[#allocation10] sm:$0xf] %v156
    %161 = vst [vmem:[#allocation10 + $0x4] sm:$0xf] %v157
    %162 = vst [vmem:[#allocation10 + $0x8] sm:$0xf] %v158
    %163 = vst [vmem:[#allocation10 + $0xc] sm:$0xf] %v159
    %v164 = vld [vmem:[#allocation2] sm:$0xf]
    %v165 = vld [vmem:[#allocation2 + $0x4] sm:$0xf]
    %v166 = vld [vmem:[#allocation2 + $0x8] sm:$0xf]
    %v167 = vld [vmem:[#allocation2 + $0xc] sm:$0xf]
    %v168 = vld [vmem:[#allocation2 + $0x10] sm:$0xf]
    %v169 = vld [vmem:[#allocation2 + $0x14] sm:$0xf]
    %v170 = vld [vmem:[#allocation2 + $0x18] sm:$0xf]
    %v171 = vld [vmem:[#allocation2 + $0x1c] sm:$0xf]
    %v172 = vld [vmem:[#allocation2 + $0x20] sm:$0xf]
    %v173 = vld [vmem:[#allocation2 + $0x24] sm:$0xf]
    %v174 = vld [vmem:[#allocation2 + $0x28] sm:$0xf]
    %v175 = vld [vmem:[#allocation2 + $0x2c] sm:$0xf]
    %v176 = vld [vmem:[#allocation2 + $0x30] sm:$0xf]
    %v177 = vld [vmem:[#allocation2 + $0x34] sm:$0xf]
    %v178 = vld [vmem:[#allocation2 + $0x38] sm:$0xf]
    %v179 = vld [vmem:[#allocation2 + $0x3c] sm:$0xf]
    %v184 = vunpack.c.l.b16 %v156
    %v185 = vunpack.c.l.b16 %v157
    %v186 = vunpack.c.l.b16 %v158
    %v187 = vunpack.c.l.b16 %v159
    %v188 = vpack.c.b16 %v185, %v184
    %v189 = vpack.c.b16 %v187, %v186
    %v208 = vunpack.c.l.b16 %v164
    %v209 = vunpack.c.l.b16 %v165
    %v210 = vunpack.c.l.b16 %v166
    %v211 = vunpack.c.l.b16 %v167
    %v212 = vunpack.c.l.b16 %v168
    %v213 = vunpack.c.l.b16 %v169
    %v214 = vunpack.c.l.b16 %v170
    %v215 = vunpack.c.l.b16 %v171
    %v216 = vunpack.c.l.b16 %v172
    %v217 = vunpack.c.l.b16 %v173
    %v218 = vunpack.c.l.b16 %v174
    %v219 = vunpack.c.l.b16 %v175
    %v220 = vunpack.c.l.b16 %v176
    %v221 = vunpack.c.l.b16 %v177
    %v222 = vunpack.c.l.b16 %v178
    %v223 = vunpack.c.l.b16 %v179
    %v224 = vpack.c.b16 %v209, %v208
    %v225 = vpack.c.b16 %v211, %v210
    %v226 = vpack.c.b16 %v213, %v212
    %v227 = vpack.c.b16 %v215, %v214
    %v228 = vpack.c.b16 %v217, %v216
    %v229 = vpack.c.b16 %v219, %v218
    %v230 = vpack.c.b16 %v221, %v220
    %v231 = vpack.c.b16 %v223, %v222
    %240 = vmatpush.bf16.msra.mxu0 %v231
    %241 = vmatpush.bf16.msra.mxu0 %v230
    %242 = vmatpush.bf16.msra.mxu0 %v229
    %243 = vmatpush.bf16.msra.mxu0 %v228
    %244 = vmatpush.bf16.msra.mxu0 %v227
    %245 = vmatpush.bf16.msra.mxu0 %v226
    %246 = vmatpush.bf16.msra.mxu0 %v225
    %247 = vmatpush.bf16.msra.mxu0 %v224
    %248 = vmatmul.bf16.gmra.mxu0 %v188
    %v249 = vpop.f32.mrf.mxu0
    %v250 = vadd.f32 0.0, %v249
    %v251 = vpop.f32.mrf.mxu0
    %v252 = vadd.f32 0.0, %v251
    %253 = vmatmul.bf16.gmra.mxu0 %v189
    %v254 = vpop.f32.mrf.mxu0
    %v255 = vadd.f32 0.0, %v254
    %v256 = vpop.f32.mrf.mxu0
    %v257 = vadd.f32 0.0, %v256
    %258 = vdwg.mxu0
    %v259 = vpack.c.bf16 %v250, %v250
    %v260 = vpack.c.bf16 %v252, %v252
    %v261 = vpack.c.bf16 %v255, %v255
    %v262 = vpack.c.bf16 %v257, %v257
    %263 = vst [vmem:[#allocation11] sm:$0xf] %v259
    %264 = vst [vmem:[#allocation11 + $0x4] sm:$0xf] %v260
    %265 = vst [vmem:[#allocation11 + $0x8] sm:$0xf] %v261
    %266 = vst [vmem:[#allocation11 + $0xc] sm:$0xf] %v262
    %v267 = vld [vmem:[#allocation5] sm:$0xf]
    %v268 = vld [vmem:[#allocation5 + $0x4] sm:$0xf]
    %v269 = vld [vmem:[#allocation5 + $0x8] sm:$0xf]
    %v270 = vld [vmem:[#allocation5 + $0xc] sm:$0xf]
    %v271 = vld [vmem:[#allocation5 + $0x10] sm:$0xf]
    %v272 = vld [vmem:[#allocation5 + $0x14] sm:$0xf]
    %v273 = vld [vmem:[#allocation5 + $0x18] sm:$0xf]
    %v274 = vld [vmem:[#allocation5 + $0x1c] sm:$0xf]
    %v275 = vld [vmem:[#allocation5 + $0x20] sm:$0xf]
    %v276 = vld [vmem:[#allocation5 + $0x24] sm:$0xf]
    %v277 = vld [vmem:[#allocation5 + $0x28] sm:$0xf]
    %v278 = vld [vmem:[#allocation5 + $0x2c] sm:$0xf]
    %v279 = vld [vmem:[#allocation5 + $0x30] sm:$0xf]
    %v280 = vld [vmem:[#allocation5 + $0x34] sm:$0xf]
    %v281 = vld [vmem:[#allocation5 + $0x38] sm:$0xf]
    %v282 = vld [vmem:[#allocation5 + $0x3c] sm:$0xf]
    %v283 = vld [vmem:[%s5] sm:$0x1]
    %v285 = vperm.slane %v283, 0
    %v303 = vunpack.c.l.b16 %v267
    %v304 = vunpack.c.l.b16 %v268
    %v305 = vunpack.c.l.b16 %v269
    %v306 = vunpack.c.l.b16 %v270
    %v307 = vunpack.c.l.b16 %v271
    %v308 = vunpack.c.l.b16 %v272
    %v309 = vunpack.c.l.b16 %v273
    %v310 = vunpack.c.l.b16 %v274
    %v311 = vunpack.c.l.b16 %v275
    %v312 = vunpack.c.l.b16 %v276
    %v313 = vunpack.c.l.b16 %v277
    %v314 = vunpack.c.l.b16 %v278
    %v315 = vunpack.c.l.b16 %v279
    %v316 = vunpack.c.l.b16 %v280
    %v317 = vunpack.c.l.b16 %v281
    %v318 = vunpack.c.l.b16 %v282
    %v319 = vpack.c.b16 %v304, %v303
    %v320 = vpack.c.b16 %v306, %v305
    %v321 = vpack.c.b16 %v308, %v307
    %v322 = vpack.c.b16 %v310, %v309
    %v323 = vpack.c.b16 %v312, %v311
    %v324 = vpack.c.b16 %v314, %v313
    %v325 = vpack.c.b16 %v316, %v315
    %v326 = vpack.c.b16 %v318, %v317
    %335 = vmatpush.bf16.msra.mxu0 %v326
    %336 = vmatpush.bf16.msra.mxu0 %v325
    %337 = vmatpush.bf16.msra.mxu0 %v324
    %338 = vmatpush.bf16.msra.mxu0 %v323
    %339 = vmatpush.bf16.msra.mxu0 %v322
    %340 = vmatpush.bf16.msra.mxu0 %v321
    %341 = vmatpush.bf16.msra.mxu0 %v320
    %342 = vmatpush.bf16.msra.mxu0 %v319
    %343 = vmatmul.bf16.gmra.mxu0 %v188
    %v344 = vpop.f32.mrf.mxu0
    %v345 = vadd.f32 %v285, %v344
    %v346 = vpop.f32.mrf.mxu0
    %v347 = vadd.f32 %v285, %v346
    %348 = vmatmul.bf16.gmra.mxu0 %v189
    %v349 = vpop.f32.mrf.mxu0
    %v350 = vadd.f32 %v285, %v349
    %v351 = vpop.f32.mrf.mxu0
    %v352 = vadd.f32 %v285, %v351
    %353 = vdwg.mxu0
    %v354 = vpack.c.bf16 %v345, %v345
    %v355 = vpack.c.bf16 %v347, %v347
    %v356 = vpack.c.bf16 %v350, %v350
    %v357 = vpack.c.bf16 %v352, %v352
    %358 = vst [vmem:[#allocation13] sm:$0xf] %v354
    %359 = vst [vmem:[#allocation13 + $0x4] sm:$0xf] %v355
    %360 = vst [vmem:[#allocation13 + $0x8] sm:$0xf] %v356
    %361 = vst [vmem:[#allocation13 + $0xc] sm:$0xf] %v357
    %v362 = vld [vmem:[#allocation7] sm:$0xf]
    %v363 = vld [vmem:[#allocation7 + $0x4] sm:$0xf]
    %v364 = vld [vmem:[#allocation7 + $0x8] sm:$0xf]
    %v365 = vld [vmem:[#allocation7 + $0xc] sm:$0xf]
    %v366 = vld [vmem:[#allocation7 + $0x10] sm:$0xf]
    %v367 = vld [vmem:[#allocation7 + $0x14] sm:$0xf]
    %v368 = vld [vmem:[#allocation7 + $0x18] sm:$0xf]
    %v369 = vld [vmem:[#allocation7 + $0x1c] sm:$0xf]
    %v370 = vld [vmem:[#allocation7 + $0x20] sm:$0xf]
    %v371 = vld [vmem:[#allocation7 + $0x24] sm:$0xf]
    %v372 = vld [vmem:[#allocation7 + $0x28] sm:$0xf]
    %v373 = vld [vmem:[#allocation7 + $0x2c] sm:$0xf]
    %v374 = vld [vmem:[#allocation7 + $0x30] sm:$0xf]
    %v375 = vld [vmem:[#allocation7 + $0x34] sm:$0xf]
    %v376 = vld [vmem:[#allocation7 + $0x38] sm:$0xf]
    %v377 = vld [vmem:[#allocation7 + $0x3c] sm:$0xf]
    %v378 = vld [vmem:[%s7] sm:$0x1]
    %v380 = vperm.slane %v378, 0
    %v398 = vunpack.c.l.b16 %v362
    %v399 = vunpack.c.l.b16 %v363
    %v400 = vunpack.c.l.b16 %v364
    %v401 = vunpack.c.l.b16 %v365
    %v402 = vunpack.c.l.b16 %v366
    %v403 = vunpack.c.l.b16 %v367
    %v404 = vunpack.c.l.b16 %v368
    %v405 = vunpack.c.l.b16 %v369
    %v406 = vunpack.c.l.b16 %v370
    %v407 = vunpack.c.l.b16 %v371
    %v408 = vunpack.c.l.b16 %v372
    %v409 = vunpack.c.l.b16 %v373
    %v410 = vunpack.c.l.b16 %v374
    %v411 = vunpack.c.l.b16 %v375
    %v412 = vunpack.c.l.b16 %v376
    %v413 = vunpack.c.l.b16 %v377
    %v414 = vpack.c.b16 %v399, %v398
    %v415 = vpack.c.b16 %v401, %v400
    %v416 = vpack.c.b16 %v403, %v402
    %v417 = vpack.c.b16 %v405, %v404
    %v418 = vpack.c.b16 %v407, %v406
    %v419 = vpack.c.b16 %v409, %v408
    %v420 = vpack.c.b16 %v411, %v410
    %v421 = vpack.c.b16 %v413, %v412
    %430 = vmatpush.bf16.msra.mxu0 %v421
    %431 = vmatpush.bf16.msra.mxu0 %v420
    %432 = vmatpush.bf16.msra.mxu0 %v419
    %433 = vmatpush.bf16.msra.mxu0 %v418
    %434 = vmatpush.bf16.msra.mxu0 %v417
    %435 = vmatpush.bf16.msra.mxu0 %v416
    %436 = vmatpush.bf16.msra.mxu0 %v415
    %437 = vmatpush.bf16.msra.mxu0 %v414
    %438 = vmatmul.bf16.gmra.mxu0 %v188
    %v439 = vpop.f32.mrf.mxu0
    %v440 = vadd.f32 %v380, %v439
    %v441 = vpop.f32.mrf.mxu0
    %v442 = vadd.f32 %v380, %v441
    %443 = vmatmul.bf16.gmra.mxu0 %v189
    %v444 = vpop.f32.mrf.mxu0
    %v445 = vadd.f32 %v380, %v444
    %v446 = vpop.f32.mrf.mxu0
    %v447 = vadd.f32 %v380, %v446
    %448 = vdwg.mxu0
    %v449 = vpack.c.bf16 %v440, %v440
    %v450 = vpack.c.bf16 %v442, %v442
    %v451 = vpack.c.bf16 %v445, %v445
    %v452 = vpack.c.bf16 %v447, %v447
    %453 = vst [vmem:[#allocation14] sm:$0xf] %v449
    %454 = vst [vmem:[#allocation14 + $0x4] sm:$0xf] %v450
    %455 = vst [vmem:[#allocation14 + $0x8] sm:$0xf] %v451
    %456 = vst [vmem:[#allocation14 + $0xc] sm:$0xf] %v452
    %v457 = vld [vmem:[#allocation8] sm:$0xf]
    %v458 = vld [vmem:[#allocation8 + $0x4] sm:$0xf]
    %v459 = vld [vmem:[#allocation8 + $0x8] sm:$0xf]
    %v460 = vld [vmem:[#allocation8 + $0xc] sm:$0xf]
    %v461 = vld [vmem:[#allocation8 + $0x10] sm:$0xf]
    %v462 = vld [vmem:[#allocation8 + $0x14] sm:$0xf]
    %v463 = vld [vmem:[#allocation8 + $0x18] sm:$0xf]
    %v464 = vld [vmem:[#allocation8 + $0x1c] sm:$0xf]
    %v465 = vld [vmem:[#allocation8 + $0x20] sm:$0xf]
    %v466 = vld [vmem:[#allocation8 + $0x24] sm:$0xf]
    %v467 = vld [vmem:[#allocation8 + $0x28] sm:$0xf]
    %v468 = vld [vmem:[#allocation8 + $0x2c] sm:$0xf]
    %v469 = vld [vmem:[#allocation8 + $0x30] sm:$0xf]
    %v470 = vld [vmem:[#allocation8 + $0x34] sm:$0xf]
    %v471 = vld [vmem:[#allocation8 + $0x38] sm:$0xf]
    %v472 = vld [vmem:[#allocation8 + $0x3c] sm:$0xf]
    %v473 = vld [vmem:[%s9] sm:$0x1]
    %v475 = vperm.slane %v473, 0
    %v493 = vunpack.c.l.b16 %v457
    %v494 = vunpack.c.l.b16 %v458
    %v495 = vunpack.c.l.b16 %v459
    %v496 = vunpack.c.l.b16 %v460
    %v497 = vunpack.c.l.b16 %v461
    %v498 = vunpack.c.l.b16 %v462
    %v499 = vunpack.c.l.b16 %v463
    %v500 = vunpack.c.l.b16 %v464
    %v501 = vunpack.c.l.b16 %v465
    %v502 = vunpack.c.l.b16 %v466
    %v503 = vunpack.c.l.b16 %v467
    %v504 = vunpack.c.l.b16 %v468
    %v505 = vunpack.c.l.b16 %v469
    %v506 = vunpack.c.l.b16 %v470
    %v507 = vunpack.c.l.b16 %v471
    %v508 = vunpack.c.l.b16 %v472
    %v509 = vpack.c.b16 %v494, %v493
    %v510 = vpack.c.b16 %v496, %v495
    %v511 = vpack.c.b16 %v498, %v497
    %v512 = vpack.c.b16 %v500, %v499
    %v513 = vpack.c.b16 %v502, %v501
    %v514 = vpack.c.b16 %v504, %v503
    %v515 = vpack.c.b16 %v506, %v505
    %v516 = vpack.c.b16 %v508, %v507
    %525 = vmatpush.bf16.msra.mxu0 %v516
    %526 = vmatpush.bf16.msra.mxu0 %v515
    %527 = vmatpush.bf16.msra.mxu0 %v514
    %528 = vmatpush.bf16.msra.mxu0 %v513
    %529 = vmatpush.bf16.msra.mxu0 %v512
    %530 = vmatpush.bf16.msra.mxu0 %v511
    %531 = vmatpush.bf16.msra.mxu0 %v510
    %532 = vmatpush.bf16.msra.mxu0 %v509
    %533 = vmatmul.bf16.gmra.mxu0 %v188
    %v534 = vpop.f32.mrf.mxu0
    %v535 = vadd.f32 %v475, %v534
    %v536 = vpop.f32.mrf.mxu0
    %v537 = vadd.f32 %v475, %v536
    %538 = vmatmul.bf16.gmra.mxu0 %v189
    %v539 = vpop.f32.mrf.mxu0
    %v540 = vadd.f32 %v475, %v539
    %v541 = vpop.f32.mrf.mxu0
    %v542 = vadd.f32 %v475, %v541
    %543 = vdwg.mxu0
    %v544 = vpack.c.bf16 %v535, %v535
    %v545 = vpack.c.bf16 %v537, %v537
    %v546 = vpack.c.bf16 %v540, %v540
    %v547 = vpack.c.bf16 %v542, %v542
    %548 = vst [vmem:[#allocation16] sm:$0xf] %v544
    %549 = vst [vmem:[#allocation16 + $0x4] sm:$0xf] %v545
    %550 = vst [vmem:[#allocation16 + $0x8] sm:$0xf] %v546
    %551 = vst [vmem:[#allocation16 + $0xc] sm:$0xf] %v547
    %s552 = scalar_lea.vmem [#allocation5], 64
    %v553 = vld [vmem:[%s552] sm:$0xf]
    %v554 = vld [vmem:[%s552 + $0x4] sm:$0xf]
    %v555 = vld [vmem:[%s552 + $0x8] sm:$0xf]
    %v556 = vld [vmem:[%s552 + $0xc] sm:$0xf]
    %v557 = vld [vmem:[%s552 + $0x10] sm:$0xf]
    %v558 = vld [vmem:[%s552 + $0x14] sm:$0xf]
    %v559 = vld [vmem:[%s552 + $0x18] sm:$0xf]
    %v560 = vld [vmem:[%s552 + $0x1c] sm:$0xf]
    %v561 = vld [vmem:[%s552 + $0x20] sm:$0xf]
    %v562 = vld [vmem:[%s552 + $0x24] sm:$0xf]
    %v563 = vld [vmem:[%s552 + $0x28] sm:$0xf]
    %v564 = vld [vmem:[%s552 + $0x2c] sm:$0xf]
    %v565 = vld [vmem:[%s552 + $0x30] sm:$0xf]
    %v566 = vld [vmem:[%s552 + $0x34] sm:$0xf]
    %v567 = vld [vmem:[%s552 + $0x38] sm:$0xf]
    %v568 = vld [vmem:[%s552 + $0x3c] sm:$0xf]
    %s569 = scalar_lea.vmem %s5, 1
    %v570 = vld [vmem:[%s569] sm:$0x1]
    %v572 = vperm.slane %v570, 0
    %v590 = vunpack.c.l.b16 %v553
    %v591 = vunpack.c.l.b16 %v554
    %v592 = vunpack.c.l.b16 %v555
    %v593 = vunpack.c.l.b16 %v556
    %v594 = vunpack.c.l.b16 %v557
    %v595 = vunpack.c.l.b16 %v558
    %v596 = vunpack.c.l.b16 %v559
    %v597 = vunpack.c.l.b16 %v560
    %v598 = vunpack.c.l.b16 %v561
    %v599 = vunpack.c.l.b16 %v562
    %v600 = vunpack.c.l.b16 %v563
    %v601 = vunpack.c.l.b16 %v564
    %v602 = vunpack.c.l.b16 %v565
    %v603 = vunpack.c.l.b16 %v566
    %v604 = vunpack.c.l.b16 %v567
    %v605 = vunpack.c.l.b16 %v568
    %v606 = vpack.c.b16 %v591, %v590
    %v607 = vpack.c.b16 %v593, %v592
    %v608 = vpack.c.b16 %v595, %v594
    %v609 = vpack.c.b16 %v597, %v596
    %v610 = vpack.c.b16 %v599, %v598
    %v611 = vpack.c.b16 %v601, %v600
    %v612 = vpack.c.b16 %v603, %v602
    %v613 = vpack.c.b16 %v605, %v604
    %622 = vmatpush.bf16.msra.mxu0 %v613
    %623 = vmatpush.bf16.msra.mxu0 %v612
    %624 = vmatpush.bf16.msra.mxu0 %v611
    %625 = vmatpush.bf16.msra.mxu0 %v610
    %626 = vmatpush.bf16.msra.mxu0 %v609
    %627 = vmatpush.bf16.msra.mxu0 %v608
    %628 = vmatpush.bf16.msra.mxu0 %v607
    %629 = vmatpush.bf16.msra.mxu0 %v606
    %630 = vmatmul.bf16.gmra.mxu0 %v188
    %v631 = vpop.f32.mrf.mxu0
    %v632 = vadd.f32 %v572, %v631
    %v633 = vpop.f32.mrf.mxu0
    %v634 = vadd.f32 %v572, %v633
    %635 = vmatmul.bf16.gmra.mxu0 %v189
    %v636 = vpop.f32.mrf.mxu0
    %v637 = vadd.f32 %v572, %v636
    %v638 = vpop.f32.mrf.mxu0
    %v639 = vadd.f32 %v572, %v638
    %640 = vdwg.mxu0
    %v641 = vpack.c.bf16 %v632, %v632
    %v642 = vpack.c.bf16 %v634, %v634
    %v643 = vpack.c.bf16 %v637, %v637
    %v644 = vpack.c.bf16 %v639, %v639
    %s645 = scalar_lea.vmem [#allocation13], 16
    %646 = vst [vmem:[%s645] sm:$0xf] %v641
    %647 = vst [vmem:[%s645 + $0x4] sm:$0xf] %v642
    %648 = vst [vmem:[%s645 + $0x8] sm:$0xf] %v643
    %649 = vst [vmem:[%s645 + $0xc] sm:$0xf] %v644
    %s650 = scalar_lea.vmem [#allocation7], 64
    %v651 = vld [vmem:[%s650] sm:$0xf]
    %v652 = vld [vmem:[%s650 + $0x4] sm:$0xf]
    %v653 = vld [vmem:[%s650 + $0x8] sm:$0xf]
    %v654 = vld [vmem:[%s650 + $0xc] sm:$0xf]
    %v655 = vld [vmem:[%s650 + $0x10] sm:$0xf]
    %v656 = vld [vmem:[%s650 + $0x14] sm:$0xf]
    %v657 = vld [vmem:[%s650 + $0x18] sm:$0xf]
    %v658 = vld [vmem:[%s650 + $0x1c] sm:$0xf]
    %v659 = vld [vmem:[%s650 + $0x20] sm:$0xf]
    %v660 = vld [vmem:[%s650 + $0x24] sm:$0xf]
    %v661 = vld [vmem:[%s650 + $0x28] sm:$0xf]
    %v662 = vld [vmem:[%s650 + $0x2c] sm:$0xf]
    %v663 = vld [vmem:[%s650 + $0x30] sm:$0xf]
    %v664 = vld [vmem:[%s650 + $0x34] sm:$0xf]
    %v665 = vld [vmem:[%s650 + $0x38] sm:$0xf]
    %v666 = vld [vmem:[%s650 + $0x3c] sm:$0xf]
    %s667 = scalar_lea.vmem %s7, 1
    %v668 = vld [vmem:[%s667] sm:$0x1]
    %v670 = vperm.slane %v668, 0
    %v688 = vunpack.c.l.b16 %v651
    %v689 = vunpack.c.l.b16 %v652
    %v690 = vunpack.c.l.b16 %v653
    %v691 = vunpack.c.l.b16 %v654
    %v692 = vunpack.c.l.b16 %v655
    %v693 = vunpack.c.l.b16 %v656
    %v694 = vunpack.c.l.b16 %v657
    %v695 = vunpack.c.l.b16 %v658
    %v696 = vunpack.c.l.b16 %v659
    %v697 = vunpack.c.l.b16 %v660
    %v698 = vunpack.c.l.b16 %v661
    %v699 = vunpack.c.l.b16 %v662
    %v700 = vunpack.c.l.b16 %v663
    %v701 = vunpack.c.l.b16 %v664
    %v702 = vunpack.c.l.b16 %v665
    %v703 = vunpack.c.l.b16 %v666
    %v704 = vpack.c.b16 %v689, %v688
    %v705 = vpack.c.b16 %v691, %v690
    %v706 = vpack.c.b16 %v693, %v692
    %v707 = vpack.c.b16 %v695, %v694
    %v708 = vpack.c.b16 %v697, %v696
    %v709 = vpack.c.b16 %v699, %v698
    %v710 = vpack.c.b16 %v701, %v700
    %v711 = vpack.c.b16 %v703, %v702
    %720 = vmatpush.bf16.msra.mxu0 %v711
    %721 = vmatpush.bf16.msra.mxu0 %v710
    %722 = vmatpush.bf16.msra.mxu0 %v709
    %723 = vmatpush.bf16.msra.mxu0 %v708
    %724 = vmatpush.bf16.msra.mxu0 %v707
    %725 = vmatpush.bf16.msra.mxu0 %v706
    %726 = vmatpush.bf16.msra.mxu0 %v705
    %727 = vmatpush.bf16.msra.mxu0 %v704
    %728 = vmatmul.bf16.gmra.mxu0 %v188
    %v729 = vpop.f32.mrf.mxu0
    %v730 = vadd.f32 %v670, %v729
    %v731 = vpop.f32.mrf.mxu0
    %v732 = vadd.f32 %v670, %v731
    %733 = vmatmul.bf16.gmra.mxu0 %v189
    %v734 = vpop.f32.mrf.mxu0
    %v735 = vadd.f32 %v670, %v734
    %v736 = vpop.f32.mrf.mxu0
    %v737 = vadd.f32 %v670, %v736
    %738 = vdwg.mxu0
    %v739 = vpack.c.bf16 %v730, %v730
    %v740 = vpack.c.bf16 %v732, %v732
    %v741 = vpack.c.bf16 %v735, %v735
    %v742 = vpack.c.bf16 %v737, %v737
    %s743 = scalar_lea.vmem [#allocation14], 16
    %744 = vst [vmem:[%s743] sm:$0xf] %v739
    %745 = vst [vmem:[%s743 + $0x4] sm:$0xf] %v740
    %746 = vst [vmem:[%s743 + $0x8] sm:$0xf] %v741
    %747 = vst [vmem:[%s743 + $0xc] sm:$0xf] %v742
    %s748 = scalar_lea.vmem [#allocation8], 64
    %v749 = vld [vmem:[%s748] sm:$0xf]
    %v750 = vld [vmem:[%s748 + $0x4] sm:$0xf]
    %v751 = vld [vmem:[%s748 + $0x8] sm:$0xf]
    %v752 = vld [vmem:[%s748 + $0xc] sm:$0xf]
    %v753 = vld [vmem:[%s748 + $0x10] sm:$0xf]
    %v754 = vld [vmem:[%s748 + $0x14] sm:$0xf]
    %v755 = vld [vmem:[%s748 + $0x18] sm:$0xf]
    %v756 = vld [vmem:[%s748 + $0x1c] sm:$0xf]
    %v757 = vld [vmem:[%s748 + $0x20] sm:$0xf]
    %v758 = vld [vmem:[%s748 + $0x24] sm:$0xf]
    %v759 = vld [vmem:[%s748 + $0x28] sm:$0xf]
    %v760 = vld [vmem:[%s748 + $0x2c] sm:$0xf]
    %v761 = vld [vmem:[%s748 + $0x30] sm:$0xf]
    %v762 = vld [vmem:[%s748 + $0x34] sm:$0xf]
    %v763 = vld [vmem:[%s748 + $0x38] sm:$0xf]
    %v764 = vld [vmem:[%s748 + $0x3c] sm:$0xf]
    %s765 = scalar_lea.vmem %s9, 1
    %v766 = vld [vmem:[%s765] sm:$0x1]
    %v768 = vperm.slane %v766, 0
    %v786 = vunpack.c.l.b16 %v749
    %v787 = vunpack.c.l.b16 %v750
    %v788 = vunpack.c.l.b16 %v751
    %v789 = vunpack.c.l.b16 %v752
    %v790 = vunpack.c.l.b16 %v753
    %v791 = vunpack.c.l.b16 %v754
    %v792 = vunpack.c.l.b16 %v755
    %v793 = vunpack.c.l.b16 %v756
    %v794 = vunpack.c.l.b16 %v757
    %v795 = vunpack.c.l.b16 %v758
    %v796 = vunpack.c.l.b16 %v759
    %v797 = vunpack.c.l.b16 %v760
    %v798 = vunpack.c.l.b16 %v761
    %v799 = vunpack.c.l.b16 %v762
    %v800 = vunpack.c.l.b16 %v763
    %v801 = vunpack.c.l.b16 %v764
    %v802 = vpack.c.b16 %v787, %v786
    %v803 = vpack.c.b16 %v789, %v788
    %v804 = vpack.c.b16 %v791, %v790
    %v805 = vpack.c.b16 %v793, %v792
    %v806 = vpack.c.b16 %v795, %v794
    %v807 = vpack.c.b16 %v797, %v796
    %v808 = vpack.c.b16 %v799, %v798
    %v809 = vpack.c.b16 %v801, %v800
    %818 = vmatpush.bf16.msra.mxu0 %v809
    %819 = vmatpush.bf16.msra.mxu0 %v808
    %820 = vmatpush.bf16.msra.mxu0 %v807
    %821 = vmatpush.bf16.msra.mxu0 %v806
    %822 = vmatpush.bf16.msra.mxu0 %v805
    %823 = vmatpush.bf16.msra.mxu0 %v804
    %824 = vmatpush.bf16.msra.mxu0 %v803
    %825 = vmatpush.bf16.msra.mxu0 %v802
    %826 = vmatmul.bf16.gmra.mxu0 %v188
    %v827 = vpop.f32.mrf.mxu0
    %v828 = vadd.f32 %v768, %v827
    %v829 = vpop.f32.mrf.mxu0
    %v830 = vadd.f32 %v768, %v829
    %831 = vmatmul.bf16.gmra.mxu0 %v189
    %v832 = vpop.f32.mrf.mxu0
    %v833 = vadd.f32 %v768, %v832
    %v834 = vpop.f32.mrf.mxu0
    %v835 = vadd.f32 %v768, %v834
    %836 = vdwg.mxu0
    %v837 = vpack.c.bf16 %v828, %v828
    %v838 = vpack.c.bf16 %v830, %v830
    %v839 = vpack.c.bf16 %v833, %v833
    %v840 = vpack.c.bf16 %v835, %v835
    %s841 = scalar_lea.vmem [#allocation16], 16
    %842 = vst [vmem:[%s841] sm:$0xf] %v837
    %843 = vst [vmem:[%s841 + $0x4] sm:$0xf] %v838
    %844 = vst [vmem:[%s841 + $0x8] sm:$0xf] %v839
    %845 = vst [vmem:[%s841 + $0xc] sm:$0xf] %v840
    // Predicated region
    $region58: #{tpu_custom_call.1} parent=1 // pred_check
      _
    $region59: #{tpu_custom_call.1} parent=1 // pred_check_branch
      %847 = sbr.rel (0) target = $region61
    $region60: #{tpu_custom_call.1} parent=1 // pred_region
      %849 = vsyncadd [#allocation4], 0
      %s850 = sshll.u32 [#allocation10], 4
      %s851 = int_to_ptr.vmem [resolvable:$true] %s850
      %s852 = sshll.u32 %s10, 4
      %s853 = int_to_ptr.hbm [resolvable:$true] %s852
      %858 = dma.vmem_to_hbm [thread:$0]  %s851, 256, %s853, [#allocation4], 64, 64, 4
    $region61: #{tpu_custom_call.1} parent=1 // pred_fallthru
      _
    // Predicated region
    $region62: #{tpu_custom_call.1} parent=1 // pred_check
      _
    $region63: #{tpu_custom_call.1} parent=1 // pred_check_branch
      %860 = sbr.rel (0) target = $region65
    $region64: #{tpu_custom_call.1} parent=1 // pred_region
      %862 = vsyncadd [#allocation12], 0
      %s863 = sshll.u32 [#allocation11], 4
      %s864 = int_to_ptr.vmem [resolvable:$true] %s863
      %s865 = sshll.u32 %s11, 4
      %s866 = int_to_ptr.hbm [resolvable:$true] %s865
      %871 = dma.vmem_to_hbm [thread:$0]  %s864, 256, %s866, [#allocation12], 64, 64, 4
    $region65: #{tpu_custom_call.1} parent=1 // pred_fallthru
      _
    // Predicated region
    $region66: #{tpu_custom_call.1} parent=1 // pred_check
      _
    $region67: #{tpu_custom_call.1} parent=1 // pred_check_branch
      %873 = sbr.rel (0) target = $region69
    $region68: #{tpu_custom_call.1} parent=1 // pred_region
      %875 = vsyncadd [#allocation12], 0
      %s876 = sshll.u32 [#allocation13], 4
      %s877 = int_to_ptr.vmem [resolvable:$true] %s876
      %s878 = sshll.u32 %s12, 4
      %s879 = int_to_ptr.hbm [resolvable:$true] %s878
      %884 = dma.vmem_to_hbm [thread:$0]  %s877, 512, %s879, [#allocation12], 64, 64, 4
    $region69: #{tpu_custom_call.1} parent=1 // pred_fallthru
      _
    // Predicated region
    $region70: #{tpu_custom_call.1} parent=1 // pred_check
      _
    $region71: #{tpu_custom_call.1} parent=1 // pred_check_branch
      %886 = sbr.rel (0) target = $region73
    $region72: #{tpu_custom_call.1} parent=1 // pred_region
      %888 = vsyncadd [#allocation15], 0
      %s889 = sshll.u32 [#allocation14], 4
      %s890 = int_to_ptr.vmem [resolvable:$true] %s889
      %s891 = sshll.u32 %s13, 4
      %s892 = int_to_ptr.hbm [resolvable:$true] %s891
      %897 = dma.vmem_to_hbm [thread:$0]  %s890, 512, %s892, [#allocation15], 64, 64, 4
    $region73: #{tpu_custom_call.1} parent=1 // pred_fallthru
      _
    // Predicated region
    $region74: #{tpu_custom_call.1} parent=1 // pred_check
      _
    $region75: #{tpu_custom_call.1} parent=1 // pred_check_branch
      %899 = sbr.rel (0) target = $region77
    $region76: #{tpu_custom_call.1} parent=1 // pred_region
      %901 = vsyncadd [#allocation15], 0
      %s902 = sshll.u32 [#allocation16], 4
      %s903 = int_to_ptr.vmem [resolvable:$true] %s902
      %s904 = sshll.u32 %s14, 4
      %s905 = int_to_ptr.hbm [resolvable:$true] %s904
      %910 = dma.vmem_to_hbm [thread:$0]  %s903, 512, %s905, [#allocation15], 64, 64, 4
    $region77: #{tpu_custom_call.1} parent=1 // pred_fallthru
      _
    // Predicated region
    $region78: #{tpu_custom_call.1} parent=1 // pred_check
      _
    $region79: #{tpu_custom_call.1} parent=1 // pred_check_branch
      %912 = sbr.rel (0) target = $region81
    $region80: #{tpu_custom_call.1} parent=1 // pred_region
      %914 = dma.done [#allocation4], 256
    $region81: #{tpu_custom_call.1} parent=1 // pred_fallthru
      _
    // Predicated region
    $region82: #{tpu_custom_call.1} parent=1 // pred_check
      _
    $region83: #{tpu_custom_call.1} parent=1 // pred_check_branch
      %916 = sbr.rel (0) target = $region85
    $region84: #{tpu_custom_call.1} parent=1 // pred_region
      %918 = dma.done [#allocation12], 256
    $region85: #{tpu_custom_call.1} parent=1 // pred_fallthru
      _
    // Predicated region
    $region86: #{tpu_custom_call.1} parent=1 // pred_check
      _
    $region87: #{tpu_custom_call.1} parent=1 // pred_check_branch
      %920 = sbr.rel (0) target = $region89
    $region88: #{tpu_custom_call.1} parent=1 // pred_region
      %922 = dma.done [#allocation12], 512
    $region89: #{tpu_custom_call.1} parent=1 // pred_fallthru
      _
    // Predicated region
    $region90: #{tpu_custom_call.1} parent=1 // pred_check
      _
    $region91: #{tpu_custom_call.1} parent=1 // pred_check_branch
      %924 = sbr.rel (0) target = $region93
    $region92: #{tpu_custom_call.1} parent=1 // pred_region
      %926 = dma.done [#allocation15], 512
    $region93: #{tpu_custom_call.1} parent=1 // pred_fallthru
      _
    // Predicated region
    $region94: #{tpu_custom_call.1} parent=1 // pred_check
      _
    $region95: #{tpu_custom_call.1} parent=1 // pred_check_branch
      %928 = sbr.rel (0) target = $region97
    $region96: #{tpu_custom_call.1} parent=1 // pred_region
      %930 = dma.done [#allocation15], 512
    $region97: #{tpu_custom_call.1} parent=1 // pred_fallthru
      _
    %931 = vsyncpa [#allocation3], 1
    %932 = vsyncpa [#allocation6], 1
    %933 = vsyncpa [#allocation9], 1
    %934 = vsyncpa [#allocation4], 1
    %935 = vsyncpa [#allocation12], 1
    %936 = vsyncpa [#allocation15], 1

</llo_original>
